<compile_context>
chip_gen: v7x
topology: tpu7x:2x2x1
jax: 0.10.0
libtpu: 0.0.40
codegen_flags: <defaults>
</compile_context>

<pallas_src>
import functools

import jax
import jax.numpy as jnp
from jax.experimental import pallas as pl
from jax.experimental.pallas import tpu as pltpu


def _log_softmax(x):
    m = jnp.max(x, axis=-1, keepdims=True)
    s = x - m
    return s - jnp.log(jnp.sum(jnp.exp(s), axis=-1, keepdims=True))


def _base_cross_entropy(logits, labels_b1):
    """Mean cross-entropy; labels are a (B, 1) int32 block (vectorized one-hot)."""
    B, C = logits.shape
    logp = _log_softmax(logits)
    col = jax.lax.broadcasted_iota(jnp.int32, (B, C), 1)
    onehot = (col == labels_b1).astype(jnp.float32)
    return -jnp.sum(onehot * logp) / B


def _distill_kernel(x_ref, w_ref, b_ref, out_ref, out_kd_ref, labels_ref,
                    loss_ref, acc_ref, *, distillation_type, alpha, tau):
    k = pl.program_id(0)

    @pl.when(k == 0)
    def _():
        acc_ref[...] = jnp.zeros_like(acc_ref)

    # Inner loop is matmul-only: x streamed f32 -> bf16 cast on the VPU, w is
    # pre-cast bf16; f32 accumulation on the MXU into a (B, C) VMEM scratch.
    acc_ref[...] += jnp.dot(x_ref[...].astype(jnp.bfloat16), w_ref[...],
                            preferred_element_type=jnp.float32)

    @pl.when(k == pl.num_programs(0) - 1)
    def _():
        teacher = acc_ref[...] + b_ref[...]
        logits = out_ref[...].astype(jnp.float32)
        kd_logits = out_kd_ref[...].astype(jnp.float32)
        B, C = logits.shape

        base_loss = _base_cross_entropy(logits, labels_ref[...])

        if distillation_type == 'soft':
            # kl_div(log_softmax(kd/T), log_softmax(teacher/T), 'sum',
            #        log_target=True) * T^2 / numel
            # Teacher softmax and log-softmax share a single exp pass (EUP).
            inv_T = 1.0 / tau
            t = teacher * inv_T
            ts = t - jnp.max(t, axis=-1, keepdims=True)
            et = jnp.exp(ts)
            zt = jnp.sum(et, axis=-1, keepdims=True)
            log_t = ts - jnp.log(zt)
            p_t = et * pl.reciprocal(zt, approx=True)          # EUP slot
            log_s = _log_softmax(kd_logits * inv_T)
            kd_loss = jnp.sum(p_t * (log_t - log_s)) * (tau * tau) / float(B * C)
        else:  # 'hard'
            # cross_entropy(outputs_kd, teacher.argmax(dim=1)); first-index ties
            # (matches torch.argmax), built from max + min-over-iota.
            iota = jax.lax.broadcasted_iota(jnp.int32, (B, C), 1)
            tmax = jnp.max(teacher, axis=-1, keepdims=True)
            first_idx = jnp.min(jnp.where(teacher == tmax, iota, C), axis=-1,
                                keepdims=True)
            t_onehot = (iota == first_idx).astype(jnp.float32)
            kd_loss = -jnp.sum(t_onehot * _log_softmax(kd_logits)) / B

        loss_ref[0, 0] = base_loss * (1.0 - alpha) + kd_loss * alpha


def _base_only_kernel(out_ref, labels_ref, loss_ref):
    # 'none' path: base criterion only; teacher inputs/weights are never loaded.
    loss_ref[0, 0] = _base_cross_entropy(out_ref[...].astype(jnp.float32),
                                         labels_ref[...])


def prepare_teacher_params(teacher_w, teacher_b):
    """One-time prep (hoist outside the training step): bf16 weight resident in
    HBM and f32 (1, C) bias, so the per-call path never re-reads/re-writes the
    FIN x C weight for casting/padding."""
    return (jnp.asarray(teacher_w, jnp.bfloat16),
            jnp.asarray(teacher_b, jnp.float32).reshape(1, -1))


def _vmem_budget_bytes():
    # Size from the device: v5e/v6e have 128 MiB VMEM, v7x 64 MiB per TC.
    try:
        cap = int(pltpu.get_tpu_info().vmem_capacity_bytes)
    except Exception:
        cap = 64 * 1024 * 1024          # conservative (v7x per-TC)
    return (cap * 3) // 4               # headroom for compiler scratch


def _pick_tk(fin, requested, stream_budget, B, C, n_buf=3):
    """Largest multiple-of-128 divisor of fin that fits the request and the VMEM
    streaming budget. Avoids padded HBM copies and masked remainder tiles."""
    per_k = n_buf * (B * 4 + C * 2)     # f32 x-tile + bf16 w-tile bytes per K unit
    cap = min(int(requested), max(128, stream_budget // per_k), fin)
    if fin % 128 != 0 or cap < 128:
        return fin                      # single unblocked step
    for d in range(cap // 128, 0, -1):
        tk = d * 128
        if fin % tk == 0:
            return tk
    return fin


def _streamed_spec(shape, index_map, n_buf):
    if n_buf > 2:
        try:
            return pl.BlockSpec(shape, index_map, pipeline_mode=pl.Buffered(n_buf))
        except TypeError:  # BlockSpec without pipeline_mode: fall back to 2-deep
            pass
    return pl.BlockSpec(shape, index_map)


def distillation_loss(inputs_nchw, outputs, outputs_kd, labels,
                      teacher_w, teacher_b, *,
                      distillation_type='soft', alpha=0.5, tau=2.0, tk=8192):
    """Wrapper: flattens NCHW inputs (metadata-only reshape), streams the teacher
    Linear over K with bf16 MXU accumulation, epilogue computes the DeiT loss."""
    assert distillation_type in ('none', 'soft', 'hard')
    B = outputs.shape[0]
    C = outputs.shape[-1]
    labels2d = labels.astype(jnp.int32).reshape(B, 1)
    smem = pltpu.MemorySpace.SMEM
    vmem = pltpu.MemorySpace.VMEM

    if distillation_type == 'none':
        loss = pl.pallas_call(
            _base_only_kernel,
            out_shape=jax.ShapeDtypeStruct((1, 1), jnp.float32),
            in_specs=[pl.BlockSpec(memory_space=vmem),
                      pl.BlockSpec(memory_space=vmem)],
            out_specs=pl.BlockSpec(memory_space=smem),
        )(outputs, labels2d)
        return loss[0, 0]

    if teacher_w.dtype != jnp.bfloat16:
        # Prefer prepare_teacher_params() once outside the step; fallback only.
        teacher_w = teacher_w.astype(jnp.bfloat16)
    b = teacher_b.reshape(1, -1).astype(jnp.float32)

    # x streamed in native f32; cast to bf16 in-kernel (no wrapper cast pass).
    x = inputs_nchw.reshape(B, -1)
    fin = x.shape[1]
    assert teacher_w.shape == (fin, C)

    vmem_budget = _vmem_budget_bytes()
    tk = _pick_tk(fin, tk, (vmem_budget * 3) // 4, B, C, n_buf=3)
    n_steps = fin // tk                  # _pick_tk guarantees tk | fin
    n_buf = 3 if n_steps >= 3 else 2     # extra buffer only when worth warming up

    kernel = functools.partial(_distill_kernel,
                               distillation_type=distillation_type,
                               alpha=float(alpha), tau=float(tau))
    grid_spec = pltpu.PrefetchScalarGridSpec(
        num_scalar_prefetch=0,
        grid=(n_steps,),
        in_specs=[
            _streamed_spec((B, tk), lambda k: (0, k), n_buf),   # x  (f32, K-streamed)
            _streamed_spec((tk, C), lambda k: (k, 0), n_buf),   # w  (bf16, K-streamed)
            pl.BlockSpec((1, C), lambda k: (0, 0)),             # bias (resident)
            pl.BlockSpec((B, C), lambda k: (0, 0)),             # outputs (resident)
            pl.BlockSpec((B, C), lambda k: (0, 0)),             # outputs_kd (resident)
            pl.BlockSpec((B, 1), lambda k: (0, 0)),             # labels (int32, resident)
        ],
        out_specs=pl.BlockSpec((1, 1), lambda k: (0, 0), memory_space=smem),
        scratch_shapes=[pltpu.VMEM((B, C), jnp.float32)],
    )
    loss = pl.pallas_call(
        kernel,
        out_shape=jax.ShapeDtypeStruct((1, 1), jnp.float32),
        grid_spec=grid_spec,
        compiler_params=pltpu.CompilerParams(
            dimension_semantics=("arbitrary",),
            vmem_limit_bytes=vmem_budget),
    )(x, teacher_w, b, outputs, outputs_kd, labels2d)
    return loss[0, 0]


# ---- pure-JAX reference (correctness check only) ----
def _ref_loss(inputs_nchw, outputs, outputs_kd, labels, teacher_w, teacher_b,
              distillation_type, alpha, tau):
    B = outputs.shape[0]
    C = outputs.shape[-1]
    logp = jax.nn.log_softmax(outputs.astype(jnp.float32), axis=-1)
    onehot = jax.nn.one_hot(labels, C, dtype=jnp.float32)
    base = -jnp.sum(onehot * logp) / B
    if distillation_type == 'none':
        return base
    # Mirror the kernel's bf16 weight/activation streaming (f32 accumulation).
    x = inputs_nchw.reshape(B, -1).astype(jnp.bfloat16).astype(jnp.float32)
    w = teacher_w.astype(jnp.bfloat16).astype(jnp.float32)
    teacher = x @ w + teacher_b.reshape(1, -1)
    kd_logits = outputs_kd.astype(jnp.float32)
    if distillation_type == 'soft':
        T = tau
        log_s = jax.nn.log_softmax(kd_logits / T, axis=-1)
        log_t = jax.nn.log_softmax(teacher / T, axis=-1)
        kd = jnp.sum(jnp.exp(log_t) * (log_t - log_s)) * (T * T) / kd_logits.size
    else:
        t_idx = jnp.argmax(teacher, axis=-1)
        kd = -jnp.sum(jax.nn.one_hot(t_idx, C) *
                      jax.nn.log_softmax(kd_logits, axis=-1)) / B
    return base * (1.0 - alpha) + kd * alpha


if __name__ == "__main__":
    key = jax.random.PRNGKey(0)
    k_in, k_out, k_kd, k_lbl, k_w = jax.random.split(key, 5)

    B, Cin, H, W = 8, 4, 16, 16
    NUM_CLASSES = 128
    FIN = Cin * H * W  # 1024

    inputs = jax.random.normal(k_in, (B, Cin, H, W), dtype=jnp.float32)
    outputs = jax.random.normal(k_out, (B, NUM_CLASSES), dtype=jnp.float32)
    outputs_kd = jax.random.normal(k_kd, (B, NUM_CLASSES), dtype=jnp.float32)
    labels = jax.random.randint(k_lbl, (B,), 0, NUM_CLASSES, dtype=jnp.int32)

    # Deterministic synthetic teacher params: Linear(FIN -> NUM_CLASSES)
    # TODO(synk): an arbitrary teacher nn.Module / base_criterion cannot be lowered
    # into one Pallas kernel; a Linear teacher + mean CE base loss stand in.
    teacher_w = jax.random.normal(k_w, (FIN, NUM_CLASSES), dtype=jnp.float32)
    teacher_w = teacher_w / jnp.sqrt(jnp.float32(FIN))
    teacher_b = jnp.zeros((1, NUM_CLASSES), dtype=jnp.float32)

    # One-time prep (hoisted out of the per-call path): bf16 HBM-resident weight.
    w_bf16, b_f32 = prepare_teacher_params(teacher_w, teacher_b)

    ok = True
    for dtype_ in ('soft', 'hard', 'none'):
        want = _ref_loss(inputs, outputs, outputs_kd, labels,
                         teacher_w, teacher_b, dtype_, 0.5, 2.0)
        # default tk (single K step at FIN=1024) and a small tk that exercises
        # the multi-step, 3-deep buffered K-streaming pipeline.
        for tk_req in (8192, 256):
            got = distillation_loss(inputs, outputs, outputs_kd, labels,
                                    w_bf16, b_f32,
                                    distillation_type=dtype_, alpha=0.5, tau=2.0,
                                    tk=tk_req)
            got = jax.block_until_ready(got)
            if not jnp.allclose(got, want, rtol=1e-3, atol=1e-3):
                ok = False
                print(f"mismatch for {dtype_} (tk={tk_req}): got={got}, want={want}")

    if ok:
        print("KERNEL_OK")
</pallas_src>

<mosaic_0001>
module attributes {stable_mosaic.version = 11 : i64} {
  func.func @_distill_kernel(%arg0: i32, %arg1: memref<8x1024xf32, #tpu.memory_space<vmem>>, %arg2: memref<1024x128xbf16, #tpu.memory_space<vmem>>, %arg3: memref<1x128xf32, #tpu.memory_space<vmem>>, %arg4: memref<8x128xf32, #tpu.memory_space<vmem>>, %arg5: memref<8x128xf32, #tpu.memory_space<vmem>>, %arg6: memref<8x1xi32, #tpu.memory_space<vmem>>, %arg7: memref<1x1xf32, #tpu.memory_space<smem>>, %arg8: memref<8x128xf32, #tpu.memory_space<vmem>>) attributes {dimension_semantics = [#tpu.dimension_semantics<arbitrary>], iteration_bounds = array<i64: 1>, scalar_prefetch = 0 : i64, scratch_operands = 1 : i64, tpu.core_type = #tpu.core_type<tc>, window_params = [{transform_indices = @transform_0, window_bounds = array<i64: 8, 1024>}, {transform_indices = @transform_1, window_bounds = array<i64: 1024, 128>}, {pipeline_mode = #tpu.pipeline_mode<synchronous>, transform_indices = @transform_2, window_bounds = array<i64: 1, 128>}, {pipeline_mode = #tpu.pipeline_mode<synchronous>, transform_indices = @transform_3, window_bounds = array<i64: 8, 128>}, {pipeline_mode = #tpu.pipeline_mode<synchronous>, transform_indices = @transform_4, window_bounds = array<i64: 8, 128>}, {pipeline_mode = #tpu.pipeline_mode<synchronous>, transform_indices = @transform_5, window_bounds = array<i64: 8, 1>}, {transform_indices = @transform_6, window_bounds = array<i64: 1, 1>}]} {
    %c0_i32 = arith.constant 0 : i32
    %0 = arith.cmpi eq, %arg0, %c0_i32 : i32
    %1 = arith.extui %0 : i1 to i32
    %c0_i32_0 = arith.constant 0 : i32
    %2 = arith.cmpi ne, %1, %c0_i32_0 : i32
    scf.if %2 {
      %cst_10 = arith.constant 0.000000e+00 : f32
      %13 = vector.broadcast %cst_10 : f32 to vector<8x128xf32>
      %c0_11 = arith.constant 0 : index
      %c0_12 = arith.constant 0 : index
      %14 = vector.load %arg8[%c0_11, %c0_12] : memref<8x128xf32, #tpu.memory_space<vmem>>, vector<8x128xf32>
      tpu.vector_store %arg8[%c0_11, %c0_12], %13 {strides = array<i32>} : memref<8x128xf32, #tpu.memory_space<vmem>>, vector<8x128xf32>,
    } else {
    }
    %c0 = arith.constant 0 : index
    %c0_1 = arith.constant 0 : index
    %3 = vector.load %arg8[%c0, %c0_1] : memref<8x128xf32, #tpu.memory_space<vmem>>, vector<8x128xf32>
    %c0_2 = arith.constant 0 : index
    %c0_3 = arith.constant 0 : index
    %4 = vector.load %arg1[%c0_2, %c0_3] : memref<8x1024xf32, #tpu.memory_space<vmem>>, vector<8x1024xf32>
    %5 = arith.truncf %4 : vector<8x1024xf32> to vector<8x1024xbf16>
    %c0_4 = arith.constant 0 : index
    %c0_5 = arith.constant 0 : index
    %6 = vector.load %arg2[%c0_4, %c0_5] : memref<1024x128xbf16, #tpu.memory_space<vmem>>, vector<1024x128xbf16>
    %cst = arith.constant dense<0.000000e+00> : vector<8x128xf32>
    %7 = tpu.matmul %5, %6, %cst {dimension_numbers = #tpu.dot_dimension_numbers<[1], [0], [0], [1], [0, 0, 1, 1], [], []>} : vector<8x1024xbf16>, vector<1024x128xbf16>, vector<8x128xf32> -> vector<8x128xf32>
    %8 = arith.addf %3, %7 : vector<8x128xf32>
    %c0_6 = arith.constant 0 : index
    %c0_7 = arith.constant 0 : index
    %9 = vector.load %arg8[%c0_6, %c0_7] : memref<8x128xf32, #tpu.memory_space<vmem>>, vector<8x128xf32>
    tpu.vector_store %arg8[%c0_6, %c0_7], %8 {strides = array<i32>} : memref<8x128xf32, #tpu.memory_space<vmem>>, vector<8x128xf32>,
    %c0_i32_8 = arith.constant 0 : i32
    %10 = arith.cmpi eq, %arg0, %c0_i32_8 : i32
    %11 = arith.extui %10 : i1 to i32
    %c0_i32_9 = arith.constant 0 : i32
    %12 = arith.cmpi ne, %11, %c0_i32_9 : i32
    scf.if %12 {
      %c0_10 = arith.constant 0 : index
      %c0_11 = arith.constant 0 : index
      %13 = vector.load %arg8[%c0_10, %c0_11] : memref<8x128xf32, #tpu.memory_space<vmem>>, vector<8x128xf32>
      %c0_12 = arith.constant 0 : index
      %c0_13 = arith.constant 0 : index
      %14 = vector.load %arg3[%c0_12, %c0_13] : memref<1x128xf32, #tpu.memory_space<vmem>>, vector<1x128xf32>
      %15 = vector.broadcast %14 : vector<1x128xf32> to vector<8x128xf32>
      %16 = arith.addf %13, %15 : vector<8x128xf32>
      %c0_14 = arith.constant 0 : index
      %c0_15 = arith.constant 0 : index
      %17 = vector.load %arg4[%c0_14, %c0_15] : memref<8x128xf32, #tpu.memory_space<vmem>>, vector<8x128xf32>
      %c0_16 = arith.constant 0 : index
      %c0_17 = arith.constant 0 : index
      %18 = vector.load %arg5[%c0_16, %c0_17] : memref<8x128xf32, #tpu.memory_space<vmem>>, vector<8x128xf32>
      %c0_18 = arith.constant 0 : index
      %c0_19 = arith.constant 0 : index
      %19 = vector.load %arg6[%c0_18, %c0_19] : memref<8x1xi32, #tpu.memory_space<vmem>>, vector<8x1xi32>
      %cst_20 = arith.constant dense<0xFF800000> : vector<8xf32>
      %20 = vector.multi_reduction <maximumf>, %17, %cst_20 [1] : vector<8x128xf32> to vector<8xf32>
      %21 = vector.shape_cast %20 : vector<8xf32> to vector<8x1xf32>
      %22 = vector.broadcast %21 : vector<8x1xf32> to vector<8x128xf32>
      %23 = arith.subf %17, %22 : vector<8x128xf32>
      %24 = math.exp %23 : vector<8x128xf32>
      %cst_21 = arith.constant dense<0.000000e+00> : vector<8xf32>
      %25 = vector.multi_reduction <add>, %24, %cst_21 [1] : vector<8x128xf32> to vector<8xf32>
      %26 = vector.shape_cast %25 : vector<8xf32> to vector<8x1xf32>
      %27 = math.log %26 : vector<8x1xf32>
      %28 = vector.broadcast %27 : vector<8x1xf32> to vector<8x128xf32>
      %29 = arith.subf %23, %28 : vector<8x128xf32>
      %30 = tpu.iota {dimensions = array<i32: 1>} : vector<8x128xi32>
      %31 = vector.broadcast %19 : vector<8x1xi32> to vector<8x128xi32>
      %32 = arith.cmpi eq, %30, %31 : vector<8x128xi32>
      %33 = arith.extui %32 : vector<8x128xi1> to vector<8x128xi32>
      %34 = arith.sitofp %33 : vector<8x128xi32> to vector<8x128xf32>
      %35 = arith.mulf %34, %29 : vector<8x128xf32>
      %36 = vector.shape_cast %35 : vector<8x128xf32> to vector<1x8x128xf32>
      %cst_22 = arith.constant dense<0.000000e+00> : vector<1xf32>
      %37 = vector.multi_reduction <add>, %36, %cst_22 [1, 2] : vector<1x8x128xf32> to vector<1xf32>
      %38 = vector.shape_cast %37 : vector<1xf32> to vector<1x1x1xf32>
      %39 = vector.extract %38[0, 0, 0] : f32 from vector<1x1x1xf32>
      %cst_23 = arith.constant 0.000000e+00 : f32
      %40 = arith.subf %cst_23, %39 : f32
      %cst_24 = arith.constant 8.000000e+00 : f32
      %41 = arith.divf %40, %cst_24 : f32
      %cst_25 = arith.constant 5.000000e-01 : f32
      %42 = vector.broadcast %cst_25 : f32 to vector<8x128xf32>
      %43 = arith.mulf %16, %42 : vector<8x128xf32>
      %cst_26 = arith.constant dense<0xFF800000> : vector<8xf32>
      %44 = vector.multi_reduction <maximumf>, %43, %cst_26 [1] : vector<8x128xf32> to vector<8xf32>
      %45 = vector.shape_cast %44 : vector<8xf32> to vector<8x1xf32>
      %46 = vector.broadcast %45 : vector<8x1xf32> to vector<8x128xf32>
      %47 = arith.subf %43, %46 : vector<8x128xf32>
      %48 = math.exp %47 : vector<8x128xf32>
      %cst_27 = arith.constant dense<0.000000e+00> : vector<8xf32>
      %49 = vector.multi_reduction <add>, %48, %cst_27 [1] : vector<8x128xf32> to vector<8xf32>
      %50 = vector.shape_cast %49 : vector<8xf32> to vector<8x1xf32>
      %51 = math.log %50 : vector<8x1xf32>
      %52 = vector.broadcast %51 : vector<8x1xf32> to vector<8x128xf32>
      %53 = arith.subf %47, %52 : vector<8x128xf32>
      %54 = tpu.reciprocal %50 {approx = true} : vector<8x1xf32> -> vector<8x1xf32>
      %55 = vector.broadcast %54 : vector<8x1xf32> to vector<8x128xf32>
      %56 = arith.mulf %48, %55 : vector<8x128xf32>
      %cst_28 = arith.constant 5.000000e-01 : f32
      %57 = vector.broadcast %cst_28 : f32 to vector<8x128xf32>
      %58 = arith.mulf %18, %57 : vector<8x128xf32>
      %cst_29 = arith.constant dense<0xFF800000> : vector<8xf32>
      %59 = vector.multi_reduction <maximumf>, %58, %cst_29 [1] : vector<8x128xf32> to vector<8xf32>
      %60 = vector.shape_cast %59 : vector<8xf32> to vector<8x1xf32>
      %61 = vector.broadcast %60 : vector<8x1xf32> to vector<8x128xf32>
      %62 = arith.subf %58, %61 : vector<8x128xf32>
      %63 = math.exp %62 : vector<8x128xf32>
      %cst_30 = arith.constant dense<0.000000e+00> : vector<8xf32>
      %64 = vector.multi_reduction <add>, %63, %cst_30 [1] : vector<8x128xf32> to vector<8xf32>
      %65 = vector.shape_cast %64 : vector<8xf32> to vector<8x1xf32>
      %66 = math.log %65 : vector<8x1xf32>
      %67 = vector.broadcast %66 : vector<8x1xf32> to vector<8x128xf32>
      %68 = arith.subf %62, %67 : vector<8x128xf32>
      %69 = arith.subf %53, %68 : vector<8x128xf32>
      %70 = arith.mulf %56, %69 : vector<8x128xf32>
      %71 = vector.shape_cast %70 : vector<8x128xf32> to vector<1x8x128xf32>
      %cst_31 = arith.constant dense<0.000000e+00> : vector<1xf32>
      %72 = vector.multi_reduction <add>, %71, %cst_31 [1, 2] : vector<1x8x128xf32> to vector<1xf32>
      %73 = vector.shape_cast %72 : vector<1xf32> to vector<1x1x1xf32>
      %74 = vector.extract %73[0, 0, 0] : f32 from vector<1x1x1xf32>
      %cst_32 = arith.constant 4.000000e+00 : f32
      %75 = arith.mulf %74, %cst_32 : f32
      %cst_33 = arith.constant 1.024000e+03 : f32
      %76 = arith.divf %75, %cst_33 : f32
      %cst_34 = arith.constant 5.000000e-01 : f32
      %77 = arith.mulf %41, %cst_34 : f32
      %cst_35 = arith.constant 5.000000e-01 : f32
      %78 = arith.mulf %76, %cst_35 : f32
      %79 = arith.addf %77, %78 : f32
      %c0_36 = arith.constant 0 : index
      %c0_37 = arith.constant 0 : index
      %80 = memref.load %arg7[%c0_36, %c0_37] : memref<1x1xf32, #tpu.memory_space<smem>>
      memref.store %79, %arg7[%c0_36, %c0_37] : memref<1x1xf32, #tpu.memory_space<smem>>
    } else {
    }
    return
  }
  func.func @transform_0(%arg0: i32) -> (i32, i32) {
    %c0_i32 = arith.constant 0 : i32
    %c0_i32_0 = arith.constant 0 : i32
    return %c0_i32, %arg0 : i32, i32
  }
  func.func @transform_1(%arg0: i32) -> (i32, i32) {
    %c0_i32 = arith.constant 0 : i32
    %c0_i32_0 = arith.constant 0 : i32
    return %arg0, %c0_i32 : i32, i32
  }
  func.func @transform_2(%arg0: i32) -> (i32, i32) {
    %c0_i32 = arith.constant 0 : i32
    %c0_i32_0 = arith.constant 0 : i32
    %c0_i32_1 = arith.constant 0 : i32
    return %c0_i32, %c0_i32_0 : i32, i32
  }
  func.func @transform_3(%arg0: i32) -> (i32, i32) {
    %c0_i32 = arith.constant 0 : i32
    %c0_i32_0 = arith.constant 0 : i32
    %c0_i32_1 = arith.constant 0 : i32
    return %c0_i32, %c0_i32_0 : i32, i32
  }
  func.func @transform_4(%arg0: i32) -> (i32, i32) {
    %c0_i32 = arith.constant 0 : i32
    %c0_i32_0 = arith.constant 0 : i32
    %c0_i32_1 = arith.constant 0 : i32
    return %c0_i32, %c0_i32_0 : i32, i32
  }
  func.func @transform_5(%arg0: i32) -> (i32, i32) {
    %c0_i32 = arith.constant 0 : i32
    %c0_i32_0 = arith.constant 0 : i32
    %c0_i32_1 = arith.constant 0 : i32
    return %c0_i32, %c0_i32_0 : i32, i32
  }
  func.func @transform_6(%arg0: i32) -> (i32, i32) {
    %c0_i32 = arith.constant 0 : i32
    %c0_i32_0 = arith.constant 0 : i32
    %c0_i32_1 = arith.constant 0 : i32
    return %c0_i32, %c0_i32_0 : i32, i32
  }
}

</mosaic_0001>

<llo_original>
// kernel: tpu_custom_call.1
$region0: #{tpu_custom_call.1}
  #allocation0 [shape = 'u32[]', space=smem, size = 0x4, offset = 0x4, fixed_abs, tag = 'smem constant byte address 0x4 - core index']
  #allocation1 [shape = 'u32[144,128]{1,0:T(1,128)}', space=vmem, size = 0x12000, scoped, tag = 'internal scratch']
  #allocation2 [shape = 'f32[8,128]{1,0:T(8,128)}', space=vmem, size = 0x1000, scoped, tag = 'scratch operand']
  %s0 = inlined_call_operand.hbm [shape: f32[8,1024], index: 0, kind: input, shape index: {}]
  %s1 = inlined_call_operand.hbm [shape: bf16[1024,128], index: 1, kind: input, shape index: {}]
  %s2 = inlined_call_operand.hbm [shape: f32[1,128], index: 2, kind: input, shape index: {}]
  %s3 = inlined_call_operand.vmem [shape: f32[8,128], index: 3, kind: input, shape index: {}]
  %s4 = inlined_call_operand.vmem [shape: f32[8,128], index: 4, kind: input, shape index: {}]
  %s5 = inlined_call_operand.vmem [shape: s32[8,1], index: 5, kind: input, shape index: {}]
  %s6 = inlined_call_operand.hbm [shape: f32[1,1], index: 6, kind: output, shape index: {}]
  %s7 = sld [smem:[#allocation0]]
  $region54: #{tpu_custom_call.1} parent=0
    _
  %s9 = ssub.s32 1, %s7
  %s10 = scalar_select 0, %s9, %s7
  $region1: #{tpu_custom_call.1} parent=0
    #allocation3 [shape = 'u8[32768]{0}', space=vmem, size = 0x8000, scoped, tag = 'input window, operand 0, single buffered']
    #allocation4 [shape = 's32[1]{0}', space=sflag, size = 0x4, scoped, tag = 'scoped memory for tpu_custom_call.1']
    #allocation5 [shape = 's32[1]{0}', space=sflag, size = 0x4, scoped, tag = 'scoped memory for tpu_custom_call.1']
    #allocation6 [shape = 'u8[262144]{0}', space=vmem, size = 0x40000, scoped, tag = 'input window, operand 1, single buffered']
    #allocation7 [shape = 's32[1]{0}', space=sflag, size = 0x4, scoped, tag = 'scoped memory for tpu_custom_call.1']
    #allocation8 [shape = 'u8[512]{0}', space=vmem, size = 0x400, scoped, tag = 'input window, operand 2, single buffered']
    #allocation9 [shape = 'u8[512]{0}', space=smem, size = 0x200, scoped, tag = 'output window, operand 0, single buffered']
    %11 = vsyncpa [#allocation4], 0
    %12 = vsyncpa [#allocation7], 0
    %13 = vsyncpa [#allocation5], 0
    // Predicated region
    $region2: #{tpu_custom_call.1} parent=1 // pred_check
      _
    $region3: #{tpu_custom_call.1} parent=1 // pred_check_branch
      %15 = sbr.rel (0) target = $region5
    $region4: #{tpu_custom_call.1} parent=1 // pred_region
      %s17 = ssub.s32 1024, 1024
      %18 = vsyncadd [#allocation4], %s17
      %s20 = sshll.u32 [#allocation3], 4
      %s21 = int_to_ptr.vmem [resolvable:$true] %s20
      %23 = dma.hbm_to_vmem [thread:$0]  %s0, 1024, %s21, [#allocation4]
    $region5: #{tpu_custom_call.1} parent=1 // pred_fallthru
      _
    // Predicated region
    $region6: #{tpu_custom_call.1} parent=1 // pred_check
      _
    $region7: #{tpu_custom_call.1} parent=1 // pred_check_branch
      %25 = sbr.rel (0) target = $region9
    $region8: #{tpu_custom_call.1} parent=1 // pred_region
      %s27 = ssub.s32 8192, 8192
      %28 = vsyncadd [#allocation7], %s27
      %s29 = sshll.u32 [#allocation6], 4
      %s30 = int_to_ptr.vmem [resolvable:$true] %s29
      %35 = dma.hbm_to_vmem [thread:$0]  %s1, 8192, %s30, [#allocation7], 64, 64, 4
    $region9: #{tpu_custom_call.1} parent=1 // pred_fallthru
      _
    // Predicated region
    $region10: #{tpu_custom_call.1} parent=1 // pred_check
      _
    $region11: #{tpu_custom_call.1} parent=1 // pred_check_branch
      %37 = sbr.rel (0) target = $region13
    $region12: #{tpu_custom_call.1} parent=1 // pred_region
      %s39 = ssub.s32 16, 16
      %40 = vsyncadd [#allocation7], %s39
      %s42 = sshll.u32 [#allocation8], 4
      %s43 = int_to_ptr.vmem [resolvable:$true] %s42
      %45 = dma.hbm_to_vmem [thread:$0]  %s2, 16, %s43, [#allocation7]
    $region13: #{tpu_custom_call.1} parent=1 // pred_fallthru
      _
    // Predicated region
    $region14: #{tpu_custom_call.1} parent=1 // pred_check
      _
    $region15: #{tpu_custom_call.1} parent=1 // pred_check_branch
      %47 = sbr.rel (0) target = $region17
    $region16: #{tpu_custom_call.1} parent=1 // pred_region
      _
    $region17: #{tpu_custom_call.1} parent=1 // pred_fallthru
      _
    // Predicated region
    $region18: #{tpu_custom_call.1} parent=1 // pred_check
      _
    $region19: #{tpu_custom_call.1} parent=1 // pred_check_branch
      %49 = sbr.rel (0) target = $region21
    $region20: #{tpu_custom_call.1} parent=1 // pred_region
      _
    $region21: #{tpu_custom_call.1} parent=1 // pred_fallthru
      _
    // Predicated region
    $region22: #{tpu_custom_call.1} parent=1 // pred_check
      _
    $region23: #{tpu_custom_call.1} parent=1 // pred_check_branch
      %51 = sbr.rel (0) target = $region25
    $region24: #{tpu_custom_call.1} parent=1 // pred_region
      _
    $region25: #{tpu_custom_call.1} parent=1 // pred_fallthru
      _
    // Predicated region
    $region26: #{tpu_custom_call.1} parent=1 // pred_check
      _
    $region27: #{tpu_custom_call.1} parent=1 // pred_check_branch
      %53 = sbr.rel (0) target = $region29
    $region28: #{tpu_custom_call.1} parent=1 // pred_region
      %54 = dma.done [#allocation4], 1024
    $region29: #{tpu_custom_call.1} parent=1 // pred_fallthru
      _
    // Predicated region
    $region30: #{tpu_custom_call.1} parent=1 // pred_check
      _
    $region31: #{tpu_custom_call.1} parent=1 // pred_check_branch
      %56 = sbr.rel (0) target = $region33
    $region32: #{tpu_custom_call.1} parent=1 // pred_region
      %57 = dma.done [#allocation7], 8192
    $region33: #{tpu_custom_call.1} parent=1 // pred_fallthru
      _
    // Predicated region
    $region34: #{tpu_custom_call.1} parent=1 // pred_check
      _
    $region35: #{tpu_custom_call.1} parent=1 // pred_check_branch
      %59 = sbr.rel (0) target = $region37
    $region36: #{tpu_custom_call.1} parent=1 // pred_region
      %60 = dma.done [#allocation7], 16
    $region37: #{tpu_custom_call.1} parent=1 // pred_fallthru
      _
    %p62 = scmp.eq.s32.totalorder 0, 0
    // Predicated region
    $region38: #{tpu_custom_call.1} parent=1 // pred_check
      %p63 = pneg %p62
    $region39: #{tpu_custom_call.1} parent=1 // pred_check_branch
      %65 = sbr.rel (%p63) target = $region41
    $region40: #{tpu_custom_call.1} parent=1 // pred_region
      %66 = vst [vmem:[#allocation2] sm:$0xff] 0.0
    $region41: #{tpu_custom_call.1} parent=1 // pred_fallthru
      _
    %v67 = vld [vmem:[#allocation2] sm:$0xff]
    %v68 = vld [vmem:[#allocation3] sm:$0xff]
    %v69 = vld [vmem:[#allocation3 + $0x8] sm:$0xff]
    %v70 = vld [vmem:[#allocation3 + $0x10] sm:$0xff]
    %v71 = vld [vmem:[#allocation3 + $0x18] sm:$0xff]
    %v72 = vld [vmem:[#allocation3 + $0x20] sm:$0xff]
    %v73 = vld [vmem:[#allocation3 + $0x28] sm:$0xff]
    %v74 = vld [vmem:[#allocation3 + $0x30] sm:$0xff]
    %v75 = vld [vmem:[#allocation3 + $0x38] sm:$0xff]
    %v76 = vpack.c.bf16 %v68, %v68
    %v77 = vpack.c.bf16 %v69, %v69
    %v78 = vpack.c.bf16 %v70, %v70
    %v79 = vpack.c.bf16 %v71, %v71
    %v80 = vpack.c.bf16 %v72, %v72
    %v81 = vpack.c.bf16 %v73, %v73
    %v82 = vpack.c.bf16 %v74, %v74
    %v83 = vpack.c.bf16 %v75, %v75
    %v84 = vld [vmem:[#allocation6] sm:$0xf]
    %v85 = vld [vmem:[#allocation6 + $0x4] sm:$0xf]
    %v86 = vld [vmem:[#allocation6 + $0x8] sm:$0xf]
    %v87 = vld [vmem:[#allocation6 + $0xc] sm:$0xf]
    %v88 = vld [vmem:[#allocation6 + $0x10] sm:$0xf]
    %v89 = vld [vmem:[#allocation6 + $0x14] sm:$0xf]
    %v90 = vld [vmem:[#allocation6 + $0x18] sm:$0xf]
    %v91 = vld [vmem:[#allocation6 + $0x1c] sm:$0xf]
    %v92 = vld [vmem:[#allocation6 + $0x20] sm:$0xf]
    %v93 = vld [vmem:[#allocation6 + $0x24] sm:$0xf]
    %v94 = vld [vmem:[#allocation6 + $0x28] sm:$0xf]
    %v95 = vld [vmem:[#allocation6 + $0x2c] sm:$0xf]
    %v96 = vld [vmem:[#allocation6 + $0x30] sm:$0xf]
    %v97 = vld [vmem:[#allocation6 + $0x34] sm:$0xf]
    %v98 = vld [vmem:[#allocation6 + $0x38] sm:$0xf]
    %v99 = vld [vmem:[#allocation6 + $0x3c] sm:$0xf]
    %v100 = vld [vmem:[#allocation6 + $0x40] sm:$0xf]
    %v101 = vld [vmem:[#allocation6 + $0x44] sm:$0xf]
    %v102 = vld [vmem:[#allocation6 + $0x48] sm:$0xf]
    %v103 = vld [vmem:[#allocation6 + $0x4c] sm:$0xf]
    %v104 = vld [vmem:[#allocation6 + $0x50] sm:$0xf]
    %v105 = vld [vmem:[#allocation6 + $0x54] sm:$0xf]
    %v106 = vld [vmem:[#allocation6 + $0x58] sm:$0xf]
    %v107 = vld [vmem:[#allocation6 + $0x5c] sm:$0xf]
    %v108 = vld [vmem:[#allocation6 + $0x60] sm:$0xf]
    %v109 = vld [vmem:[#allocation6 + $0x64] sm:$0xf]
    %v110 = vld [vmem:[#allocation6 + $0x68] sm:$0xf]
    %v111 = vld [vmem:[#allocation6 + $0x6c] sm:$0xf]
    %v112 = vld [vmem:[#allocation6 + $0x70] sm:$0xf]
    %v113 = vld [vmem:[#allocation6 + $0x74] sm:$0xf]
    %v114 = vld [vmem:[#allocation6 + $0x78] sm:$0xf]
    %v115 = vld [vmem:[#allocation6 + $0x7c] sm:$0xf]
    %v116 = vld [vmem:[#allocation6 + $0x80] sm:$0xf]
    %v117 = vld [vmem:[#allocation6 + $0x84] sm:$0xf]
    %v118 = vld [vmem:[#allocation6 + $0x88] sm:$0xf]
    %v119 = vld [vmem:[#allocation6 + $0x8c] sm:$0xf]
    %v120 = vld [vmem:[#allocation6 + $0x90] sm:$0xf]
    %v121 = vld [vmem:[#allocation6 + $0x94] sm:$0xf]
    %v122 = vld [vmem:[#allocation6 + $0x98] sm:$0xf]
    %v123 = vld [vmem:[#allocation6 + $0x9c] sm:$0xf]
    %v124 = vld [vmem:[#allocation6 + $0xa0] sm:$0xf]
    %v125 = vld [vmem:[#allocation6 + $0xa4] sm:$0xf]
    %v126 = vld [vmem:[#allocation6 + $0xa8] sm:$0xf]
    %v127 = vld [vmem:[#allocation6 + $0xac] sm:$0xf]
    %v128 = vld [vmem:[#allocation6 + $0xb0] sm:$0xf]
    %v129 = vld [vmem:[#allocation6 + $0xb4] sm:$0xf]
    %v130 = vld [vmem:[#allocation6 + $0xb8] sm:$0xf]
    %v131 = vld [vmem:[#allocation6 + $0xbc] sm:$0xf]
    %v132 = vld [vmem:[#allocation6 + $0xc0] sm:$0xf]
    %v133 = vld [vmem:[#allocation6 + $0xc4] sm:$0xf]
    %v134 = vld [vmem:[#allocation6 + $0xc8] sm:$0xf]
    %v135 = vld [vmem:[#allocation6 + $0xcc] sm:$0xf]
    %v136 = vld [vmem:[#allocation6 + $0xd0] sm:$0xf]
    %v137 = vld [vmem:[#allocation6 + $0xd4] sm:$0xf]
    %v138 = vld [vmem:[#allocation6 + $0xd8] sm:$0xf]
    %v139 = vld [vmem:[#allocation6 + $0xdc] sm:$0xf]
    %v140 = vld [vmem:[#allocation6 + $0xe0] sm:$0xf]
    %v141 = vld [vmem:[#allocation6 + $0xe4] sm:$0xf]
    %v142 = vld [vmem:[#allocation6 + $0xe8] sm:$0xf]
    %v143 = vld [vmem:[#allocation6 + $0xec] sm:$0xf]
    %v144 = vld [vmem:[#allocation6 + $0xf0] sm:$0xf]
    %v145 = vld [vmem:[#allocation6 + $0xf4] sm:$0xf]
    %v146 = vld [vmem:[#allocation6 + $0xf8] sm:$0xf]
    %v147 = vld [vmem:[#allocation6 + $0xfc] sm:$0xf]
    %v148 = vld [vmem:[#allocation6 + $0x100] sm:$0xf]
    %v149 = vld [vmem:[#allocation6 + $0x104] sm:$0xf]
    %v150 = vld [vmem:[#allocation6 + $0x108] sm:$0xf]
    %v151 = vld [vmem:[#allocation6 + $0x10c] sm:$0xf]
    %v152 = vld [vmem:[#allocation6 + $0x110] sm:$0xf]
    %v153 = vld [vmem:[#allocation6 + $0x114] sm:$0xf]
    %v154 = vld [vmem:[#allocation6 + $0x118] sm:$0xf]
    %v155 = vld [vmem:[#allocation6 + $0x11c] sm:$0xf]
    %v156 = vld [vmem:[#allocation6 + $0x120] sm:$0xf]
    %v157 = vld [vmem:[#allocation6 + $0x124] sm:$0xf]
    %v158 = vld [vmem:[#allocation6 + $0x128] sm:$0xf]
    %v159 = vld [vmem:[#allocation6 + $0x12c] sm:$0xf]
    %v160 = vld [vmem:[#allocation6 + $0x130] sm:$0xf]
    %v161 = vld [vmem:[#allocation6 + $0x134] sm:$0xf]
    %v162 = vld [vmem:[#allocation6 + $0x138] sm:$0xf]
    %v163 = vld [vmem:[#allocation6 + $0x13c] sm:$0xf]
    %v164 = vld [vmem:[#allocation6 + $0x140] sm:$0xf]
    %v165 = vld [vmem:[#allocation6 + $0x144] sm:$0xf]
    %v166 = vld [vmem:[#allocation6 + $0x148] sm:$0xf]
    %v167 = vld [vmem:[#allocation6 + $0x14c] sm:$0xf]
    %v168 = vld [vmem:[#allocation6 + $0x150] sm:$0xf]
    %v169 = vld [vmem:[#allocation6 + $0x154] sm:$0xf]
    %v170 = vld [vmem:[#allocation6 + $0x158] sm:$0xf]
    %v171 = vld [vmem:[#allocation6 + $0x15c] sm:$0xf]
    %v172 = vld [vmem:[#allocation6 + $0x160] sm:$0xf]
    %v173 = vld [vmem:[#allocation6 + $0x164] sm:$0xf]
    %v174 = vld [vmem:[#allocation6 + $0x168] sm:$0xf]
    %v175 = vld [vmem:[#allocation6 + $0x16c] sm:$0xf]
    %v176 = vld [vmem:[#allocation6 + $0x170] sm:$0xf]
    %v177 = vld [vmem:[#allocation6 + $0x174] sm:$0xf]
    %v178 = vld [vmem:[#allocation6 + $0x178] sm:$0xf]
    %v179 = vld [vmem:[#allocation6 + $0x17c] sm:$0xf]
    %v180 = vld [vmem:[#allocation6 + $0x180] sm:$0xf]
    %v181 = vld [vmem:[#allocation6 + $0x184] sm:$0xf]
    %v182 = vld [vmem:[#allocation6 + $0x188] sm:$0xf]
    %v183 = vld [vmem:[#allocation6 + $0x18c] sm:$0xf]
    %v184 = vld [vmem:[#allocation6 + $0x190] sm:$0xf]
    %v185 = vld [vmem:[#allocation6 + $0x194] sm:$0xf]
    %v186 = vld [vmem:[#allocation6 + $0x198] sm:$0xf]
    %v187 = vld [vmem:[#allocation6 + $0x19c] sm:$0xf]
    %v188 = vld [vmem:[#allocation6 + $0x1a0] sm:$0xf]
    %v189 = vld [vmem:[#allocation6 + $0x1a4] sm:$0xf]
    %v190 = vld [vmem:[#allocation6 + $0x1a8] sm:$0xf]
    %v191 = vld [vmem:[#allocation6 + $0x1ac] sm:$0xf]
    %v192 = vld [vmem:[#allocation6 + $0x1b0] sm:$0xf]
    %v193 = vld [vmem:[#allocation6 + $0x1b4] sm:$0xf]
    %v194 = vld [vmem:[#allocation6 + $0x1b8] sm:$0xf]
    %v195 = vld [vmem:[#allocation6 + $0x1bc] sm:$0xf]
    %v196 = vld [vmem:[#allocation6 + $0x1c0] sm:$0xf]
    %v197 = vld [vmem:[#allocation6 + $0x1c4] sm:$0xf]
    %v198 = vld [vmem:[#allocation6 + $0x1c8] sm:$0xf]
    %v199 = vld [vmem:[#allocation6 + $0x1cc] sm:$0xf]
    %v200 = vld [vmem:[#allocation6 + $0x1d0] sm:$0xf]
    %v201 = vld [vmem:[#allocation6 + $0x1d4] sm:$0xf]
    %v202 = vld [vmem:[#allocation6 + $0x1d8] sm:$0xf]
    %v203 = vld [vmem:[#allocation6 + $0x1dc] sm:$0xf]
    %v204 = vld [vmem:[#allocation6 + $0x1e0] sm:$0xf]
    %v205 = vld [vmem:[#allocation6 + $0x1e4] sm:$0xf]
    %v206 = vld [vmem:[#allocation6 + $0x1e8] sm:$0xf]
    %v207 = vld [vmem:[#allocation6 + $0x1ec] sm:$0xf]
    %v208 = vld [vmem:[#allocation6 + $0x1f0] sm:$0xf]
    %v209 = vld [vmem:[#allocation6 + $0x1f4] sm:$0xf]
    %v210 = vld [vmem:[#allocation6 + $0x1f8] sm:$0xf]
    %v211 = vld [vmem:[#allocation6 + $0x1fc] sm:$0xf]
    %v340 = vunpack.c.l.b16 %v84
    %v341 = vunpack.c.l.b16 %v85
    %v342 = vunpack.c.l.b16 %v86
    %v343 = vunpack.c.l.b16 %v87
    %v344 = vunpack.c.l.b16 %v88
    %v345 = vunpack.c.l.b16 %v89
    %v346 = vunpack.c.l.b16 %v90
    %v347 = vunpack.c.l.b16 %v91
    %v348 = vunpack.c.l.b16 %v92
    %v349 = vunpack.c.l.b16 %v93
    %v350 = vunpack.c.l.b16 %v94
    %v351 = vunpack.c.l.b16 %v95
    %v352 = vunpack.c.l.b16 %v96
    %v353 = vunpack.c.l.b16 %v97
    %v354 = vunpack.c.l.b16 %v98
    %v355 = vunpack.c.l.b16 %v99
    %v356 = vunpack.c.l.b16 %v100
    %v357 = vunpack.c.l.b16 %v101
    %v358 = vunpack.c.l.b16 %v102
    %v359 = vunpack.c.l.b16 %v103
    %v360 = vunpack.c.l.b16 %v104
    %v361 = vunpack.c.l.b16 %v105
    %v362 = vunpack.c.l.b16 %v106
    %v363 = vunpack.c.l.b16 %v107
    %v364 = vunpack.c.l.b16 %v108
    %v365 = vunpack.c.l.b16 %v109
    %v366 = vunpack.c.l.b16 %v110
    %v367 = vunpack.c.l.b16 %v111
    %v368 = vunpack.c.l.b16 %v112
    %v369 = vunpack.c.l.b16 %v113
    %v370 = vunpack.c.l.b16 %v114
    %v371 = vunpack.c.l.b16 %v115
    %v372 = vunpack.c.l.b16 %v116
    %v373 = vunpack.c.l.b16 %v117
    %v374 = vunpack.c.l.b16 %v118
    %v375 = vunpack.c.l.b16 %v119
    %v376 = vunpack.c.l.b16 %v120
    %v377 = vunpack.c.l.b16 %v121
    %v378 = vunpack.c.l.b16 %v122
    %v379 = vunpack.c.l.b16 %v123
    %v380 = vunpack.c.l.b16 %v124
    %v381 = vunpack.c.l.b16 %v125
    %v382 = vunpack.c.l.b16 %v126
    %v383 = vunpack.c.l.b16 %v127
    %v384 = vunpack.c.l.b16 %v128
    %v385 = vunpack.c.l.b16 %v129
    %v386 = vunpack.c.l.b16 %v130
    %v387 = vunpack.c.l.b16 %v131
    %v388 = vunpack.c.l.b16 %v132
    %v389 = vunpack.c.l.b16 %v133
    %v390 = vunpack.c.l.b16 %v134
    %v391 = vunpack.c.l.b16 %v135
    %v392 = vunpack.c.l.b16 %v136
    %v393 = vunpack.c.l.b16 %v137
    %v394 = vunpack.c.l.b16 %v138
    %v395 = vunpack.c.l.b16 %v139
    %v396 = vunpack.c.l.b16 %v140
    %v397 = vunpack.c.l.b16 %v141
    %v398 = vunpack.c.l.b16 %v142
    %v399 = vunpack.c.l.b16 %v143
    %v400 = vunpack.c.l.b16 %v144
    %v401 = vunpack.c.l.b16 %v145
    %v402 = vunpack.c.l.b16 %v146
    %v403 = vunpack.c.l.b16 %v147
    %v404 = vunpack.c.l.b16 %v148
    %v405 = vunpack.c.l.b16 %v149
    %v406 = vunpack.c.l.b16 %v150
    %v407 = vunpack.c.l.b16 %v151
    %v408 = vunpack.c.l.b16 %v152
    %v409 = vunpack.c.l.b16 %v153
    %v410 = vunpack.c.l.b16 %v154
    %v411 = vunpack.c.l.b16 %v155
    %v412 = vunpack.c.l.b16 %v156
    %v413 = vunpack.c.l.b16 %v157
    %v414 = vunpack.c.l.b16 %v158
    %v415 = vunpack.c.l.b16 %v159
    %v416 = vunpack.c.l.b16 %v160
    %v417 = vunpack.c.l.b16 %v161
    %v418 = vunpack.c.l.b16 %v162
    %v419 = vunpack.c.l.b16 %v163
    %v420 = vunpack.c.l.b16 %v164
    %v421 = vunpack.c.l.b16 %v165
    %v422 = vunpack.c.l.b16 %v166
    %v423 = vunpack.c.l.b16 %v167
    %v424 = vunpack.c.l.b16 %v168
    %v425 = vunpack.c.l.b16 %v169
    %v426 = vunpack.c.l.b16 %v170
    %v427 = vunpack.c.l.b16 %v171
    %v428 = vunpack.c.l.b16 %v172
    %v429 = vunpack.c.l.b16 %v173
    %v430 = vunpack.c.l.b16 %v174
    %v431 = vunpack.c.l.b16 %v175
    %v432 = vunpack.c.l.b16 %v176
    %v433 = vunpack.c.l.b16 %v177
    %v434 = vunpack.c.l.b16 %v178
    %v435 = vunpack.c.l.b16 %v179
    %v436 = vunpack.c.l.b16 %v180
    %v437 = vunpack.c.l.b16 %v181
    %v438 = vunpack.c.l.b16 %v182
    %v439 = vunpack.c.l.b16 %v183
    %v440 = vunpack.c.l.b16 %v184
    %v441 = vunpack.c.l.b16 %v185
    %v442 = vunpack.c.l.b16 %v186
    %v443 = vunpack.c.l.b16 %v187
    %v444 = vunpack.c.l.b16 %v188
    %v445 = vunpack.c.l.b16 %v189
    %v446 = vunpack.c.l.b16 %v190
    %v447 = vunpack.c.l.b16 %v191
    %v448 = vunpack.c.l.b16 %v192
    %v449 = vunpack.c.l.b16 %v193
    %v450 = vunpack.c.l.b16 %v194
    %v451 = vunpack.c.l.b16 %v195
    %v452 = vunpack.c.l.b16 %v196
    %v453 = vunpack.c.l.b16 %v197
    %v454 = vunpack.c.l.b16 %v198
    %v455 = vunpack.c.l.b16 %v199
    %v456 = vunpack.c.l.b16 %v200
    %v457 = vunpack.c.l.b16 %v201
    %v458 = vunpack.c.l.b16 %v202
    %v459 = vunpack.c.l.b16 %v203
    %v460 = vunpack.c.l.b16 %v204
    %v461 = vunpack.c.l.b16 %v205
    %v462 = vunpack.c.l.b16 %v206
    %v463 = vunpack.c.l.b16 %v207
    %v464 = vunpack.c.l.b16 %v208
    %v465 = vunpack.c.l.b16 %v209
    %v466 = vunpack.c.l.b16 %v210
    %v467 = vunpack.c.l.b16 %v211
    %v468 = vpack.c.b16 %v341, %v340
    %v469 = vpack.c.b16 %v343, %v342
    %v470 = vpack.c.b16 %v345, %v344
    %v471 = vpack.c.b16 %v347, %v346
    %v472 = vpack.c.b16 %v349, %v348
    %v473 = vpack.c.b16 %v351, %v350
    %v474 = vpack.c.b16 %v353, %v352
    %v475 = vpack.c.b16 %v355, %v354
    %v476 = vpack.c.b16 %v357, %v356
    %v477 = vpack.c.b16 %v359, %v358
    %v478 = vpack.c.b16 %v361, %v360
    %v479 = vpack.c.b16 %v363, %v362
    %v480 = vpack.c.b16 %v365, %v364
    %v481 = vpack.c.b16 %v367, %v366
    %v482 = vpack.c.b16 %v369, %v368
    %v483 = vpack.c.b16 %v371, %v370
    %v484 = vpack.c.b16 %v373, %v372
    %v485 = vpack.c.b16 %v375, %v374
    %v486 = vpack.c.b16 %v377, %v376
    %v487 = vpack.c.b16 %v379, %v378
    %v488 = vpack.c.b16 %v381, %v380
    %v489 = vpack.c.b16 %v383, %v382
    %v490 = vpack.c.b16 %v385, %v384
    %v491 = vpack.c.b16 %v387, %v386
    %v492 = vpack.c.b16 %v389, %v388
    %v493 = vpack.c.b16 %v391, %v390
    %v494 = vpack.c.b16 %v393, %v392
    %v495 = vpack.c.b16 %v395, %v394
    %v496 = vpack.c.b16 %v397, %v396
    %v497 = vpack.c.b16 %v399, %v398
    %v498 = vpack.c.b16 %v401, %v400
    %v499 = vpack.c.b16 %v403, %v402
    %v500 = vpack.c.b16 %v405, %v404
    %v501 = vpack.c.b16 %v407, %v406
    %v502 = vpack.c.b16 %v409, %v408
    %v503 = vpack.c.b16 %v411, %v410
    %v504 = vpack.c.b16 %v413, %v412
    %v505 = vpack.c.b16 %v415, %v414
    %v506 = vpack.c.b16 %v417, %v416
    %v507 = vpack.c.b16 %v419, %v418
    %v508 = vpack.c.b16 %v421, %v420
    %v509 = vpack.c.b16 %v423, %v422
    %v510 = vpack.c.b16 %v425, %v424
    %v511 = vpack.c.b16 %v427, %v426
    %v512 = vpack.c.b16 %v429, %v428
    %v513 = vpack.c.b16 %v431, %v430
    %v514 = vpack.c.b16 %v433, %v432
    %v515 = vpack.c.b16 %v435, %v434
    %v516 = vpack.c.b16 %v437, %v436
    %v517 = vpack.c.b16 %v439, %v438
    %v518 = vpack.c.b16 %v441, %v440
    %v519 = vpack.c.b16 %v443, %v442
    %v520 = vpack.c.b16 %v445, %v444
    %v521 = vpack.c.b16 %v447, %v446
    %v522 = vpack.c.b16 %v449, %v448
    %v523 = vpack.c.b16 %v451, %v450
    %v524 = vpack.c.b16 %v453, %v452
    %v525 = vpack.c.b16 %v455, %v454
    %v526 = vpack.c.b16 %v457, %v456
    %v527 = vpack.c.b16 %v459, %v458
    %v528 = vpack.c.b16 %v461, %v460
    %v529 = vpack.c.b16 %v463, %v462
    %v530 = vpack.c.b16 %v465, %v464
    %v531 = vpack.c.b16 %v467, %v466
    %596 = vmatprep.subr.bf16.mxu0 0
    %597 = vmatpush1.bf16.msra.mxu0 %v468
    %598 = vmatprep.subr.bf16.mxu0 0
    %599 = vmatpush1.bf16.msra.mxu0 %v469
    %600 = vmatprep.subr.bf16.mxu0 0
    %601 = vmatpush1.bf16.msra.mxu0 %v470
    %602 = vmatprep.subr.bf16.mxu0 0
    %603 = vmatpush1.bf16.msra.mxu0 %v471
    %604 = vmatprep.subr.bf16.mxu0 0
    %605 = vmatpush1.bf16.msra.mxu0 %v472
    %606 = vmatprep.subr.bf16.mxu0 0
    %607 = vmatpush1.bf16.msra.mxu0 %v473
    %608 = vmatprep.subr.bf16.mxu0 0
    %609 = vmatpush1.bf16.msra.mxu0 %v474
    %610 = vmatprep.subr.bf16.mxu0 0
    %611 = vmatpush1.bf16.msra.mxu0 %v475
    %612 = vmatprep.subr.bf16.mxu0 0
    %613 = vmatpush1.bf16.msra.mxu0 %v476
    %614 = vmatprep.subr.bf16.mxu0 0
    %615 = vmatpush1.bf16.msra.mxu0 %v477
    %616 = vmatprep.subr.bf16.mxu0 0
    %617 = vmatpush1.bf16.msra.mxu0 %v478
    %618 = vmatprep.subr.bf16.mxu0 0
    %619 = vmatpush1.bf16.msra.mxu0 %v479
    %620 = vmatprep.subr.bf16.mxu0 0
    %621 = vmatpush1.bf16.msra.mxu0 %v480
    %622 = vmatprep.subr.bf16.mxu0 0
    %623 = vmatpush1.bf16.msra.mxu0 %v481
    %624 = vmatprep.subr.bf16.mxu0 0
    %625 = vmatpush1.bf16.msra.mxu0 %v482
    %626 = vmatprep.subr.bf16.mxu0 0
    %627 = vmatpush1.bf16.msra.mxu0 %v483
    %628 = vmatprep.mubr.bf16.mxu0 %v77
    %629 = vmatmul.mubr.bf16.gmra.mrb[0].mxu0 %v76
    %v630 = vpop.f32.mrb[0].mxu0
    %v631 = vadd.f32 0.0, %v630
    %v632 = vpop.f32.mrb[0].mxu0
    %v633 = vpop.f32.mrb[0].mxu0
    %v634 = vpop.f32.mrb[0].mxu0
    %635 = vdwg.mxu0
    %636 = vmatprep.subr.bf16.mxu0 0
    %637 = vmatpush1.bf16.msra.mxu0 %v484
    %638 = vmatprep.subr.bf16.mxu0 0
    %639 = vmatpush1.bf16.msra.mxu0 %v485
    %640 = vmatprep.subr.bf16.mxu0 0
    %641 = vmatpush1.bf16.msra.mxu0 %v486
    %642 = vmatprep.subr.bf16.mxu0 0
    %643 = vmatpush1.bf16.msra.mxu0 %v487
    %644 = vmatprep.subr.bf16.mxu0 0
    %645 = vmatpush1.bf16.msra.mxu0 %v488
    %646 = vmatprep.subr.bf16.mxu0 0
    %647 = vmatpush1.bf16.msra.mxu0 %v489
    %648 = vmatprep.subr.bf16.mxu0 0
    %649 = vmatpush1.bf16.msra.mxu0 %v490
    %650 = vmatprep.subr.bf16.mxu0 0
    %651 = vmatpush1.bf16.msra.mxu0 %v491
    %652 = vmatprep.subr.bf16.mxu0 0
    %653 = vmatpush1.bf16.msra.mxu0 %v492
    %654 = vmatprep.subr.bf16.mxu0 0
    %655 = vmatpush1.bf16.msra.mxu0 %v493
    %656 = vmatprep.subr.bf16.mxu0 0
    %657 = vmatpush1.bf16.msra.mxu0 %v494
    %658 = vmatprep.subr.bf16.mxu0 0
    %659 = vmatpush1.bf16.msra.mxu0 %v495
    %660 = vmatprep.subr.bf16.mxu0 0
    %661 = vmatpush1.bf16.msra.mxu0 %v496
    %662 = vmatprep.subr.bf16.mxu0 0
    %663 = vmatpush1.bf16.msra.mxu0 %v497
    %664 = vmatprep.subr.bf16.mxu0 0
    %665 = vmatpush1.bf16.msra.mxu0 %v498
    %666 = vmatprep.subr.bf16.mxu0 0
    %667 = vmatpush1.bf16.msra.mxu0 %v499
    %668 = vmatprep.mubr.bf16.mxu0 %v79
    %669 = vmatmul.mubr.bf16.gmra.mrb[0].mxu0 %v78
    %v670 = vpop.f32.mrb[0].mxu0
    %v671 = vadd.f32 %v631, %v670
    %v672 = vpop.f32.mrb[0].mxu0
    %v673 = vpop.f32.mrb[0].mxu0
    %v674 = vpop.f32.mrb[0].mxu0
    %675 = vdwg.mxu0
    %676 = vmatprep.subr.bf16.mxu0 0
    %677 = vmatpush1.bf16.msra.mxu0 %v500
    %678 = vmatprep.subr.bf16.mxu0 0
    %679 = vmatpush1.bf16.msra.mxu0 %v501
    %680 = vmatprep.subr.bf16.mxu0 0
    %681 = vmatpush1.bf16.msra.mxu0 %v502
    %682 = vmatprep.subr.bf16.mxu0 0
    %683 = vmatpush1.bf16.msra.mxu0 %v503
    %684 = vmatprep.subr.bf16.mxu0 0
    %685 = vmatpush1.bf16.msra.mxu0 %v504
    %686 = vmatprep.subr.bf16.mxu0 0
    %687 = vmatpush1.bf16.msra.mxu0 %v505
    %688 = vmatprep.subr.bf16.mxu0 0
    %689 = vmatpush1.bf16.msra.mxu0 %v506
    %690 = vmatprep.subr.bf16.mxu0 0
    %691 = vmatpush1.bf16.msra.mxu0 %v507
    %692 = vmatprep.subr.bf16.mxu0 0
    %693 = vmatpush1.bf16.msra.mxu0 %v508
    %694 = vmatprep.subr.bf16.mxu0 0
    %695 = vmatpush1.bf16.msra.mxu0 %v509
    %696 = vmatprep.subr.bf16.mxu0 0
    %697 = vmatpush1.bf16.msra.mxu0 %v510
    %698 = vmatprep.subr.bf16.mxu0 0
    %699 = vmatpush1.bf16.msra.mxu0 %v511
    %700 = vmatprep.subr.bf16.mxu0 0
    %701 = vmatpush1.bf16.msra.mxu0 %v512
    %702 = vmatprep.subr.bf16.mxu0 0
    %703 = vmatpush1.bf16.msra.mxu0 %v513
    %704 = vmatprep.subr.bf16.mxu0 0
    %705 = vmatpush1.bf16.msra.mxu0 %v514
    %706 = vmatprep.subr.bf16.mxu0 0
    %707 = vmatpush1.bf16.msra.mxu0 %v515
    %708 = vmatprep.mubr.bf16.mxu0 %v81
    %709 = vmatmul.mubr.bf16.gmra.mrb[0].mxu0 %v80
    %v710 = vpop.f32.mrb[0].mxu0
    %v711 = vadd.f32 %v671, %v710
    %v712 = vpop.f32.mrb[0].mxu0
    %v713 = vpop.f32.mrb[0].mxu0
    %v714 = vpop.f32.mrb[0].mxu0
    %715 = vdwg.mxu0
    %716 = vmatprep.subr.bf16.mxu0 0
    %717 = vmatpush1.bf16.msra.mxu0 %v516
    %718 = vmatprep.subr.bf16.mxu0 0
    %719 = vmatpush1.bf16.msra.mxu0 %v517
    %720 = vmatprep.subr.bf16.mxu0 0
    %721 = vmatpush1.bf16.msra.mxu0 %v518
    %722 = vmatprep.subr.bf16.mxu0 0
    %723 = vmatpush1.bf16.msra.mxu0 %v519
    %724 = vmatprep.subr.bf16.mxu0 0
    %725 = vmatpush1.bf16.msra.mxu0 %v520
    %726 = vmatprep.subr.bf16.mxu0 0
    %727 = vmatpush1.bf16.msra.mxu0 %v521
    %728 = vmatprep.subr.bf16.mxu0 0
    %729 = vmatpush1.bf16.msra.mxu0 %v522
    %730 = vmatprep.subr.bf16.mxu0 0
    %731 = vmatpush1.bf16.msra.mxu0 %v523
    %732 = vmatprep.subr.bf16.mxu0 0
    %733 = vmatpush1.bf16.msra.mxu0 %v524
    %734 = vmatprep.subr.bf16.mxu0 0
    %735 = vmatpush1.bf16.msra.mxu0 %v525
    %736 = vmatprep.subr.bf16.mxu0 0
    %737 = vmatpush1.bf16.msra.mxu0 %v526
    %738 = vmatprep.subr.bf16.mxu0 0
    %739 = vmatpush1.bf16.msra.mxu0 %v527
    %740 = vmatprep.subr.bf16.mxu0 0
    %741 = vmatpush1.bf16.msra.mxu0 %v528
    %742 = vmatprep.subr.bf16.mxu0 0
    %743 = vmatpush1.bf16.msra.mxu0 %v529
    %744 = vmatprep.subr.bf16.mxu0 0
    %745 = vmatpush1.bf16.msra.mxu0 %v530
    %746 = vmatprep.subr.bf16.mxu0 0
    %747 = vmatpush1.bf16.msra.mxu0 %v531
    %748 = vmatprep.mubr.bf16.mxu0 %v83
    %749 = vmatmul.mubr.bf16.gmra.mrb[0].mxu0 %v82
    %v750 = vpop.f32.mrb[0].mxu0
    %v751 = vadd.f32 %v711, %v750
    %v752 = vpop.f32.mrb[0].mxu0
    %v753 = vpop.f32.mrb[0].mxu0
    %v754 = vpop.f32.mrb[0].mxu0
    %755 = vdwg.mxu0
    %v756 = vadd.f32 %v67, %v751
    %757 = vst [vmem:[#allocation2] sm:$0xff] %v756
    // Predicated region
    $region42: #{tpu_custom_call.1} parent=1 // pred_check
      %p758 = pneg %p62
    $region43: #{tpu_custom_call.1} parent=1 // pred_check_branch
      %760 = sbr.rel (%p758) target = $region45
    $region44: #{tpu_custom_call.1} parent=1 // pred_region
      %v761 = vld [vmem:[#allocation2] sm:$0xff]
      %v762 = vld [vmem:[#allocation8] sm:$0x1]
      %v764 = vlaneseq
      %v765 = vshrl.u32 %v764, 7
      %v766 = vsub.s32 0, %v765
      %v767 = vrot.slane %v762, %v766
      %v769 = vadd.f32 %v761, %v767
      %v770 = vld [vmem:[%s3] sm:$0xff]
      %v771 = vld [vmem:[%s4] sm:$0xff]
      %v772 = vld [vmem:[%s5] sm:$0xff]
      %773 = vmax.xlane.f32.xlu0 %v770
      %v774 = vpop.xlane.xlu0 %773
      %v775 = vsub.f32 %v770, %v774
      %v776 = vmul.f32 %v775, 1.442695
      %v777 = vpow.pop %v776
      %778 = vadd.xlane.f32.xlu0 %v777
      %v779 = vpop.xlane.xlu0 %778
      %v780 = vlog2.pop %v779
      %v781 = vmul.f32 %v780, 0.6931472
      %v782 = vsub.f32 %v775, %v781
      %v783 = vlaneseq
      %v784 = vand.u32 %v783, 127
      %785 = vset.pattern.permute.xlu0 0
      %786 = vperm.xlu0 %785, %v772
      %v787 = vpop.permute.xlu0 %786
      %vm788 = vcmp.eq.s32.totalorder %v784, %v787
      %v789 = vsel %vm788, 1, 0
      %v790 = vcvt.s32.f32 %v789
      %v791 = vmul.f32 %v790, %v782
      %792 = vadd.xlane.f32.xlu0 %v791
      %v793 = vpop.xlane.xlu0 %792
      %v794 = vrot.slane %v793, 4
      %v795 = vadd.f32 %v793, %v794
      %v796 = vrot.slane %v795, 2
      %v797 = vadd.f32 %v795, %v796
      %v798 = vrot.slane %v797, 1
      %v799 = vadd.f32 %v797, %v798
      %s800 = vtos %v799
      %s801 = ssub.f32 0.0, %s800
      %v802 = vrcp.pop 8.0
      %s803 = vtos %v802
      %s804 = smul.f32 %s801, %s803
      %v805 = vmul.f32 %v769, 0.5
      %806 = vmax.xlane.f32.xlu0 %v805
      %v807 = vpop.xlane.xlu0 %806
      %v808 = vsub.f32 %v805, %v807
      %v809 = vmul.f32 %v808, 1.442695
      %v810 = vpow.pop %v809
      %811 = vadd.xlane.f32.xlu0 %v810
      %v812 = vpop.xlane.xlu0 %811
      %v813 = vlog2.pop %v812
      %v814 = vmul.f32 %v813, 0.6931472
      %v815 = vsub.f32 %v808, %v814
      %v816 = vrcp.pop %v812
      %v817 = vmul.f32 %v810, %v816
      %v818 = vmul.f32 %v771, 0.5
      %819 = vmax.xlane.f32.xlu0 %v818
      %v820 = vpop.xlane.xlu0 %819
      %v821 = vsub.f32 %v818, %v820
      %v822 = vmul.f32 %v821, 1.442695
      %v823 = vpow.pop %v822
      %824 = vadd.xlane.f32.xlu0 %v823
      %v825 = vpop.xlane.xlu0 %824
      %v826 = vlog2.pop %v825
      %v827 = vmul.f32 %v826, 0.6931472
      %v828 = vsub.f32 %v821, %v827
      %v829 = vsub.f32 %v815, %v828
      %v830 = vmul.f32 %v817, %v829
      %831 = vadd.xlane.f32.xlu0 %v830
      %v832 = vpop.xlane.xlu0 %831
      %v833 = vrot.slane %v832, 4
      %v834 = vadd.f32 %v832, %v833
      %v835 = vrot.slane %v834, 2
      %v836 = vadd.f32 %v834, %v835
      %v837 = vrot.slane %v836, 1
      %v838 = vadd.f32 %v836, %v837
      %s839 = vtos %v838
      %s840 = smul.f32 %s839, 4.0
      %v841 = vrcp.pop 1024.0
      %s842 = vtos %v841
      %s843 = smul.f32 %s840, %s842
      %s844 = smul.f32 %s804, 0.5
      %s845 = smul.f32 %s843, 0.5
      %s846 = sadd.f32 %s844, %s845
      %s847 = scalar_lea.smem [#allocation9], 0
      %848 = sst [smem:[%s847]] %s846
    $region45: #{tpu_custom_call.1} parent=1 // pred_fallthru
      _
    // Predicated region
    $region46: #{tpu_custom_call.1} parent=1 // pred_check
      _
    $region47: #{tpu_custom_call.1} parent=1 // pred_check_branch
      %850 = sbr.rel (0) target = $region49
    $region48: #{tpu_custom_call.1} parent=1 // pred_region
      %s852 = ssub.s32 16, 16
      %853 = vsyncadd [#allocation5], %s852
      %856 = dma.smem_to_hbm [#allocation9], 16, %s6, [#allocation5]
    $region49: #{tpu_custom_call.1} parent=1 // pred_fallthru
      _
    // Predicated region
    $region50: #{tpu_custom_call.1} parent=1 // pred_check
      _
    $region51: #{tpu_custom_call.1} parent=1 // pred_check_branch
      %858 = sbr.rel (0) target = $region53
    $region52: #{tpu_custom_call.1} parent=1 // pred_region
      %859 = dma.done [#allocation5], 16
    $region53: #{tpu_custom_call.1} parent=1 // pred_fallthru
      _
    %860 = sfence
    %861 = vsyncpa [#allocation4], 1
    %862 = vsyncpa [#allocation7], 1
    %863 = vsyncpa [#allocation5], 1

</llo_original>
